<compile_context>
chip_gen: v5e
topology: v5e:2x2
jax: 0.10.0
libtpu: 0.0.40
codegen_flags: <defaults>
</compile_context>

<pallas_src>
import functools

import jax
import jax.numpy as jnp
from jax import lax
from jax.experimental import pallas as pl
from jax.experimental.pallas import tpu as pltpu


LN_EPS = 1e-5


def _round_up(x, m):
    return ((x + m - 1) // m) * m


def _device_kind():
    try:
        return jax.devices()[0].device_kind.lower()
    except Exception:
        return ""


def pointnet_kernel(x_ref, w_ref, p_ref, o_ref, *, n, compute_dtype, ew_dtype):
    """One grid step processes TP pillars (TP*n point rows).

    x_ref: (TP*n, d)  points, input dtype (f32); cast in VMEM before the MXU
    w_ref: (d, c)     mean-centered linear weight, compute dtype
    p_ref: (3, c)     f32 rows: [b' (mean-centered bias), gamma, beta]
    o_ref: (TP, c)    per-pillar max feature (lane-dense output)
    """
    # Linear on the MXU, f32 accumulation.  Cast x in VMEM (no extra HBM pass).
    xb = x_ref[...].astype(compute_dtype)
    y = jnp.dot(xb, w_ref[...], preferred_element_type=jnp.float32)
    y = y + p_ref[0:1, :]                          # b' (mean folded into W'/b')

    # LayerNorm: only the variance reduce remains; accumulate in f32.
    var = jnp.mean(y * y, axis=-1, keepdims=True)
    inv = lax.rsqrt(var + LN_EPS)                  # EUP slot, ~free

    # LN scale (gamma kept before the max; sign-safe).  Element-wise math in
    # ew_dtype: bf16 on v6e/v7x (2 elems/lane), f32 on v5e/older.
    z = (y.astype(ew_dtype)
         * inv.astype(ew_dtype)
         * p_ref[1:2, :].astype(ew_dtype))

    rows, c = z.shape
    tp = rows // n
    # TODO(synk): if n is not a multiple of 8, this reshape + sublane reduce is
    # unaligned; block x as 3-D (tp, n, d) or pad n on the host in that case.
    a = z.reshape(tp, n, c)

    # Max over the n points of each pillar: at most one aligned VPU halving
    # (f32 path only; keeps 8-sublane alignment), then one XLU sublane reduce.
    if jnp.dtype(ew_dtype) == jnp.dtype(jnp.float32) and n % 16 == 0:
        h = n // 2
        a = jnp.maximum(a[:, :h, :], a[:, h:, :])
    res = jnp.max(a, axis=1).astype(jnp.float32)

    # +beta and ReLU commute with the per-pillar max -> apply on (TP, c) only.
    res = jnp.maximum(res + p_ref[2:3, :], 0.0)
    o_ref[...] = res.astype(o_ref.dtype)


def simplified_pointnet(x, w, b, gamma, beta, *,
                        tile_pillars=None,
                        compute_dtype=jnp.bfloat16,
                        ew_dtype=None,
                        out_dtype=None,
                        vmem_budget_bytes=None,
                        vmem_limit_bytes=None):
    """x: (N, p, n, d) -> (N, p, c)."""
    N, p, n, d = x.shape
    c = w.shape[1]
    NP = N * p

    kind = _device_kind()
    is_old = any(t in kind for t in ("v2", "v3", "v4", "v5"))   # no bf16 VPU
    is_v7 = "v7" in kind

    # Generation-specific defaults.
    if ew_dtype is None:
        ew_dtype = (jnp.float32
                    if (is_old or jnp.dtype(compute_dtype) == jnp.dtype(jnp.float32))
                    else compute_dtype)
    if out_dtype is None:
        out_dtype = x.dtype       # keep module semantics; pass bf16 to cut HBM
    if vmem_limit_bytes is None:
        vmem_limit_bytes = (40 << 20) if is_v7 else (80 << 20)
    if vmem_budget_bytes is None:
        vmem_budget_bytes = (20 << 20) if is_v7 else (44 << 20)
    if tile_pillars is None:
        tile_pillars = 512 if is_v7 else 1024

    # Fold the LayerNorm mean into the linear parameters:
    #   y - mean_c(y) == x @ (W - rowmean_c(W)) + (b - mean(b))   (exact in f32)
    w_c = (w - jnp.mean(w, axis=1, keepdims=True)).astype(compute_dtype)
    b_c = b - jnp.mean(b)
    params = jnp.stack([b_c, gamma, beta]).astype(jnp.float32)     # (3, c)

    # Pillar tile: multiple of 8, capped by NP and a per-block VMEM budget that
    # accounts for lane padding (d, c padded to 128 in VMEM) and f32 temporaries.
    d_pad = _round_up(d, 128)
    c_pad = _round_up(c, 128)
    in_b = jnp.dtype(x.dtype).itemsize
    out_b = jnp.dtype(out_dtype).itemsize
    ew_b = jnp.dtype(ew_dtype).itemsize

    def blk_bytes(tp_):
        return (2 * tp_ * n * d_pad * in_b          # double-buffered x block
                + 2 * tp_ * c_pad * out_b           # double-buffered out block
                + tp_ * n * c_pad * (2 * 4 + ew_b)) # f32 y/var temps + ew copy

    tp = min(int(tile_pillars), _round_up(NP, 8))
    tp = max(8, _round_up(tp, 8))
    while tp > 8 and blk_bytes(tp) > vmem_budget_bytes:
        tp = max(8, _round_up(tp // 2, 8))

    # v7x: make sure the single "parallel" grid axis has >= 2 steps so both
    # TensorCores get work.
    if is_v7 and NP >= 16:
        while tp > 8 and pl.cdiv(NP, tp) < 2:
            tp = max(8, _round_up(tp // 2, 8))

    # No pad, no astype: (N,p,n,d) -> (NP*n, d) is a free row-major reshape,
    # and the ragged last block (if any) is masked by Pallas.
    x2 = x.reshape(NP * n, d)
    grid = (pl.cdiv(NP, tp),)

    out = pl.pallas_call(
        functools.partial(pointnet_kernel, n=n,
                          compute_dtype=compute_dtype, ew_dtype=ew_dtype),
        out_shape=jax.ShapeDtypeStruct((NP, c), out_dtype),
        grid_spec=pltpu.PrefetchScalarGridSpec(
            num_scalar_prefetch=0,
            grid=grid,
            in_specs=[
                pl.BlockSpec((tp * n, d), lambda i: (i, 0)),   # x rows (f32)
                pl.BlockSpec((d, c), lambda i: (0, 0)),        # W' (resident)
                pl.BlockSpec((3, c), lambda i: (0, 0)),        # [b', gamma, beta]
            ],
            out_specs=pl.BlockSpec((tp, c), lambda i: (i, 0)),
        ),
        compiler_params=pltpu.CompilerParams(
            dimension_semantics=("parallel",),
            vmem_limit_bytes=vmem_limit_bytes),
    )(x2, w_c, params)

    return out.reshape(N, p, c)


def pointnet_ref(x, w, b, gamma, beta):
    """Pure-JAX f32 reference (mirrors the PyTorch module)."""
    y = jnp.einsum("Npnd,dc->Npnc", x, w) + b
    mean = jnp.mean(y, axis=-1, keepdims=True)
    var = jnp.mean(jnp.square(y - mean), axis=-1, keepdims=True)
    yn = (y - mean) / jnp.sqrt(var + LN_EPS)
    yn = yn * gamma + beta
    return jnp.max(jnp.maximum(yn, 0.0), axis=2)


if __name__ == "__main__":
    # Small shapes consistent with the module's forward:
    # N (batch)=2, p (pillars)=8, n (points/pillar)=16, d (in_dim)=32, c=128
    N, p, n, d = 2, 8, 16, 32
    c = 128

    key = jax.random.PRNGKey(0)
    kx, kw, kb, kg, kbe = jax.random.split(key, 5)

    x = jax.random.normal(kx, (N, p, n, d), dtype=jnp.float32)
    # Deterministic parameter init (synthetic; not a checkpoint load).
    w = jax.random.normal(kw, (d, c), dtype=jnp.float32) * (1.0 / jnp.sqrt(d))
    b = jax.random.normal(kb, (c,), dtype=jnp.float32) * 0.01
    gamma = 1.0 + 0.1 * jax.random.normal(kg, (c,), dtype=jnp.float32)
    beta = 0.1 * jax.random.normal(kbe, (c,), dtype=jnp.float32)

    ref = pointnet_ref(x, w, b, gamma, beta)

    # f32 compute path (compute + element-wise in f32): tight check vs reference.
    out_f32 = simplified_pointnet(x, w, b, gamma, beta,
                                  compute_dtype=jnp.float32)
    out_f32 = jax.block_until_ready(out_f32)
    assert out_f32.shape == (N, p, c), out_f32.shape
    assert jnp.allclose(out_f32, ref, atol=1e-4, rtol=1e-4), "f32 mismatch vs reference"

    # Default bf16 MXU path (f32 accumulation; bf16 element-wise on v6e/v7x):
    # looser tolerance for bf16 operands.
    out_bf16 = simplified_pointnet(x, w, b, gamma, beta)
    out_bf16 = jax.block_until_ready(out_bf16)
    assert out_bf16.shape == (N, p, c), out_bf16.shape
    assert jnp.allclose(out_bf16, ref, atol=3e-2, rtol=3e-2), "bf16 mismatch vs reference"

    print("KERNEL_OK")
</pallas_src>

<mosaic_0001>
module attributes {stable_mosaic.version = 11 : i64} {
  func.func @pointnet_kernel(%arg0: i32, %arg1: memref<256x32xf32, #tpu.memory_space<vmem>>, %arg2: memref<32x128xf32, #tpu.memory_space<vmem>>, %arg3: memref<3x128xf32, #tpu.memory_space<vmem>>, %arg4: memref<16x128xf32, #tpu.memory_space<vmem>>) attributes {dimension_semantics = [#tpu.dimension_semantics<parallel>], iteration_bounds = array<i64: 1>, scalar_prefetch = 0 : i64, scratch_operands = 0 : i64, tpu.core_type = #tpu.core_type<tc>, window_params = [{transform_indices = @transform_0, window_bounds = array<i64: 256, 32>}, {pipeline_mode = #tpu.pipeline_mode<synchronous>, transform_indices = @transform_1, window_bounds = array<i64: 32, 128>}, {pipeline_mode = #tpu.pipeline_mode<synchronous>, transform_indices = @transform_2, window_bounds = array<i64: 3, 128>}, {transform_indices = @transform_3, window_bounds = array<i64: 16, 128>}]} {
    %c0 = arith.constant 0 : index
    %c0_0 = arith.constant 0 : index
    %0 = vector.load %arg1[%c0, %c0_0] : memref<256x32xf32, #tpu.memory_space<vmem>>, vector<256x32xf32>
    %c0_1 = arith.constant 0 : index
    %c0_2 = arith.constant 0 : index
    %1 = vector.load %arg2[%c0_1, %c0_2] : memref<32x128xf32, #tpu.memory_space<vmem>>, vector<32x128xf32>
    %cst = arith.constant dense<0.000000e+00> : vector<256x128xf32>
    %2 = tpu.matmul %0, %1, %cst {dimension_numbers = #tpu.dot_dimension_numbers<[1], [0], [0], [1], [0, 0, 1, 1], [], []>} : vector<256x32xf32>, vector<32x128xf32>, vector<256x128xf32> -> vector<256x128xf32>
    %c0_3 = arith.constant 0 : index
    %c0_4 = arith.constant 0 : index
    %3 = vector.load %arg3[%c0_3, %c0_4] : memref<3x128xf32, #tpu.memory_space<vmem>>, vector<1x128xf32>
    %4 = vector.broadcast %3 : vector<1x128xf32> to vector<256x128xf32>
    %5 = arith.addf %2, %4 : vector<256x128xf32>
    %6 = arith.mulf %5, %5 : vector<256x128xf32>
    %cst_5 = arith.constant dense<0.000000e+00> : vector<256xf32>
    %7 = vector.multi_reduction <add>, %6, %cst_5 [1] : vector<256x128xf32> to vector<256xf32>
    %8 = vector.shape_cast %7 : vector<256xf32> to vector<256x1xf32>
    %cst_6 = arith.constant 1.280000e+02 : f32
    %9 = vector.broadcast %cst_6 : f32 to vector<256x1xf32>
    %10 = arith.divf %8, %9 : vector<256x1xf32>
    %cst_7 = arith.constant 9.99999974E-6 : f32
    %11 = vector.broadcast %cst_7 : f32 to vector<256x1xf32>
    %12 = arith.addf %10, %11 : vector<256x1xf32>
    %13 = math.rsqrt %12 : vector<256x1xf32>
    %14 = vector.broadcast %13 : vector<256x1xf32> to vector<256x128xf32>
    %15 = arith.mulf %5, %14 : vector<256x128xf32>
    %c1 = arith.constant 1 : index
    %c0_8 = arith.constant 0 : index
    %16 = vector.load %arg3[%c1, %c0_8] : memref<3x128xf32, #tpu.memory_space<vmem>>, vector<1x128xf32>
    %17 = vector.broadcast %16 : vector<1x128xf32> to vector<256x128xf32>
    %18 = arith.mulf %15, %17 : vector<256x128xf32>
    %19 = vector.shape_cast %18 : vector<256x128xf32> to vector<16x16x128xf32>
    %20 = vector.extract_strided_slice %19 {offsets = [0, 0, 0], sizes = [16, 8, 128], strides = [1, 1, 1]} : vector<16x16x128xf32> to vector<16x8x128xf32>
    %21 = vector.extract_strided_slice %19 {offsets = [0, 8, 0], sizes = [16, 8, 128], strides = [1, 1, 1]} : vector<16x16x128xf32> to vector<16x8x128xf32>
    %22 = arith.maximumf %20, %21 : vector<16x8x128xf32>
    %cst_9 = arith.constant dense<0xFF800000> : vector<16x128xf32>
    %23 = vector.multi_reduction <maximumf>, %22, %cst_9 [1] : vector<16x8x128xf32> to vector<16x128xf32>
    %c2 = arith.constant 2 : index
    %c0_10 = arith.constant 0 : index
    %24 = vector.load %arg3[%c2, %c0_10] : memref<3x128xf32, #tpu.memory_space<vmem>>, vector<1x128xf32>
    %25 = vector.broadcast %24 : vector<1x128xf32> to vector<16x128xf32>
    %26 = arith.addf %23, %25 : vector<16x128xf32>
    %cst_11 = arith.constant 0.000000e+00 : f32
    %27 = vector.broadcast %cst_11 : f32 to vector<16x128xf32>
    %28 = arith.maximumf %26, %27 : vector<16x128xf32>
    %c0_12 = arith.constant 0 : index
    %c0_13 = arith.constant 0 : index
    %29 = vector.load %arg4[%c0_12, %c0_13] : memref<16x128xf32, #tpu.memory_space<vmem>>, vector<16x128xf32>
    tpu.vector_store %arg4[%c0_12, %c0_13], %28 {strides = array<i32>} : memref<16x128xf32, #tpu.memory_space<vmem>>, vector<16x128xf32>,
    return
  }
  func.func @transform_0(%arg0: i32) -> (i32, i32) {
    %c0_i32 = arith.constant 0 : i32
    %c0_i32_0 = arith.constant 0 : i32
    return %arg0, %c0_i32 : i32, i32
  }
  func.func @transform_1(%arg0: i32) -> (i32, i32) {
    %c0_i32 = arith.constant 0 : i32
    %c0_i32_0 = arith.constant 0 : i32
    %c0_i32_1 = arith.constant 0 : i32
    return %c0_i32, %c0_i32_0 : i32, i32
  }
  func.func @transform_2(%arg0: i32) -> (i32, i32) {
    %c0_i32 = arith.constant 0 : i32
    %c0_i32_0 = arith.constant 0 : i32
    %c0_i32_1 = arith.constant 0 : i32
    return %c0_i32, %c0_i32_0 : i32, i32
  }
  func.func @transform_3(%arg0: i32) -> (i32, i32) {
    %c0_i32 = arith.constant 0 : i32
    %c0_i32_0 = arith.constant 0 : i32
    return %arg0, %c0_i32 : i32, i32
  }
}

</mosaic_0001>

<llo_original>
// kernel: tpu_custom_call.1
$region0: #{tpu_custom_call.1}
  #allocation0 [shape = 'u32[]', space=smem, size = 0x4, offset = 0x4, fixed_abs, tag = 'smem constant byte address 0x4 - core index']
  #allocation1 [shape = 'u32[72,128]{1,0:T(1,128)}', space=vmem, size = 0x9000, scoped, tag = 'internal scratch']
  %s0 = inlined_call_operand.vmem [shape: f32[256,32], index: 0, kind: input, shape index: {}]
  %s1 = inlined_call_operand.vmem [shape: f32[32,128], index: 1, kind: input, shape index: {}]
  %s2 = inlined_call_operand.vmem [shape: f32[3,128], index: 2, kind: input, shape index: {}]
  %s3 = inlined_call_operand.hbm [shape: f32[16,128], index: 3, kind: output, shape index: {}]
  %s4 = sld [smem:[#allocation0]]
  $region22: #{tpu_custom_call.1} parent=0
    _
  %s6 = ssub.s32 1, %s4
  %s7 = scalar_select 0, %s6, %s4
  $region1: #{tpu_custom_call.1} parent=0
    #allocation2 [shape = 'u8[8192]{0}', space=vmem, size = 0x2000, scoped, tag = 'output window, operand 0, single buffered']
    #allocation3 [shape = 's32[1]{0}', space=sflag, size = 0x4, scoped, tag = 'scoped memory for tpu_custom_call.1']
    %8 = vsyncpa [#allocation3], 0
    // Predicated region
    $region2: #{tpu_custom_call.1} parent=1 // pred_check
      _
    $region3: #{tpu_custom_call.1} parent=1 // pred_check_branch
      %10 = sbr.rel (0) target = $region5
    $region4: #{tpu_custom_call.1} parent=1 // pred_region
      _
    $region5: #{tpu_custom_call.1} parent=1 // pred_fallthru
      _
    // Predicated region
    $region6: #{tpu_custom_call.1} parent=1 // pred_check
      _
    $region7: #{tpu_custom_call.1} parent=1 // pred_check_branch
      %12 = sbr.rel (0) target = $region9
    $region8: #{tpu_custom_call.1} parent=1 // pred_region
      _
    $region9: #{tpu_custom_call.1} parent=1 // pred_fallthru
      _
    // Predicated region
    $region10: #{tpu_custom_call.1} parent=1 // pred_check
      _
    $region11: #{tpu_custom_call.1} parent=1 // pred_check_branch
      %14 = sbr.rel (0) target = $region13
    $region12: #{tpu_custom_call.1} parent=1 // pred_region
      _
    $region13: #{tpu_custom_call.1} parent=1 // pred_fallthru
      _
    %v15 = vld [vmem:[%s0] sm:$0xff]
    %v16 = vld [vmem:[%s0 + $0x8] sm:$0xff]
    %v17 = vld [vmem:[%s0 + $0x10] sm:$0xff]
    %v18 = vld [vmem:[%s0 + $0x18] sm:$0xff]
    %v19 = vld [vmem:[%s0 + $0x20] sm:$0xff]
    %v20 = vld [vmem:[%s0 + $0x28] sm:$0xff]
    %v21 = vld [vmem:[%s0 + $0x30] sm:$0xff]
    %v22 = vld [vmem:[%s0 + $0x38] sm:$0xff]
    %v23 = vld [vmem:[%s0 + $0x40] sm:$0xff]
    %v24 = vld [vmem:[%s0 + $0x48] sm:$0xff]
    %v25 = vld [vmem:[%s0 + $0x50] sm:$0xff]
    %v26 = vld [vmem:[%s0 + $0x58] sm:$0xff]
    %v27 = vld [vmem:[%s0 + $0x60] sm:$0xff]
    %v28 = vld [vmem:[%s0 + $0x68] sm:$0xff]
    %v29 = vld [vmem:[%s0 + $0x70] sm:$0xff]
    %v30 = vld [vmem:[%s0 + $0x78] sm:$0xff]
    %v31 = vld [vmem:[%s0 + $0x80] sm:$0xff]
    %v32 = vld [vmem:[%s0 + $0x88] sm:$0xff]
    %v33 = vld [vmem:[%s0 + $0x90] sm:$0xff]
    %v34 = vld [vmem:[%s0 + $0x98] sm:$0xff]
    %v35 = vld [vmem:[%s0 + $0xa0] sm:$0xff]
    %v36 = vld [vmem:[%s0 + $0xa8] sm:$0xff]
    %v37 = vld [vmem:[%s0 + $0xb0] sm:$0xff]
    %v38 = vld [vmem:[%s0 + $0xb8] sm:$0xff]
    %v39 = vld [vmem:[%s0 + $0xc0] sm:$0xff]
    %v40 = vld [vmem:[%s0 + $0xc8] sm:$0xff]
    %v41 = vld [vmem:[%s0 + $0xd0] sm:$0xff]
    %v42 = vld [vmem:[%s0 + $0xd8] sm:$0xff]
    %v43 = vld [vmem:[%s0 + $0xe0] sm:$0xff]
    %v44 = vld [vmem:[%s0 + $0xe8] sm:$0xff]
    %v45 = vld [vmem:[%s0 + $0xf0] sm:$0xff]
    %v46 = vld [vmem:[%s0 + $0xf8] sm:$0xff]
    %v47 = vld [vmem:[%s1] sm:$0xff]
    %v48 = vld [vmem:[%s1 + $0x8] sm:$0xff]
    %v49 = vld [vmem:[%s1 + $0x10] sm:$0xff]
    %v50 = vld [vmem:[%s1 + $0x18] sm:$0xff]
    %v51 = vld [vmem:[%s2] sm:$0x1]
    %v52 = vperm.slane %v51, 0
    %vm53 = vcmask 261120
    %v55 = vsel %vm53, %v15, 0
    %v58 = vsel %vm53, %v16, 0
    %v61 = vsel %vm53, %v17, 0
    %v64 = vsel %vm53, %v18, 0
    %v67 = vsel %vm53, %v19, 0
    %v70 = vsel %vm53, %v20, 0
    %v73 = vsel %vm53, %v21, 0
    %v76 = vsel %vm53, %v22, 0
    %v79 = vsel %vm53, %v23, 0
    %v82 = vsel %vm53, %v24, 0
    %v85 = vsel %vm53, %v25, 0
    %v88 = vsel %vm53, %v26, 0
    %v91 = vsel %vm53, %v27, 0
    %v94 = vsel %vm53, %v28, 0
    %v97 = vsel %vm53, %v29, 0
    %v100 = vsel %vm53, %v30, 0
    %v103 = vsel %vm53, %v31, 0
    %v106 = vsel %vm53, %v32, 0
    %v109 = vsel %vm53, %v33, 0
    %v112 = vsel %vm53, %v34, 0
    %v115 = vsel %vm53, %v35, 0
    %v118 = vsel %vm53, %v36, 0
    %v121 = vsel %vm53, %v37, 0
    %v124 = vsel %vm53, %v38, 0
    %v127 = vsel %vm53, %v39, 0
    %v130 = vsel %vm53, %v40, 0
    %v133 = vsel %vm53, %v41, 0
    %v136 = vsel %vm53, %v42, 0
    %v139 = vsel %vm53, %v43, 0
    %v142 = vsel %vm53, %v44, 0
    %v145 = vsel %vm53, %v45, 0
    %v148 = vsel %vm53, %v46, 0
    %150 = vmatpush.msra.mxu0 0.0
    %151 = vmatpush.msra.mxu0 0.0
    %152 = vmatpush.msra.mxu0 0.0
    %153 = vmatpush.msra.mxu0 0.0
    %154 = vmatpush.msra.mxu0 0.0
    %155 = vmatpush.msra.mxu0 0.0
    %156 = vmatpush.msra.mxu0 0.0
    %157 = vmatpush.msra.mxu0 0.0
    %158 = vmatpush.msra.mxu0 0.0
    %159 = vmatpush.msra.mxu0 0.0
    %160 = vmatpush.msra.mxu0 0.0
    %161 = vmatpush.msra.mxu0 0.0
    %162 = vmatpush.msra.mxu0 %v50
    %163 = vmatpush.msra.mxu0 %v49
    %164 = vmatpush.msra.mxu0 %v48
    %165 = vmatpush.msra.mxu0 %v47
    %166 = vmatmul.f32.gmra.mxu0 %v55
    %v167 = vpop.f32.mrf.mxu0
    %v168 = vadd.f32 %v52, %v167
    %169 = vmatmul.f32.gmra.mxu0 %v58
    %v170 = vpop.f32.mrf.mxu0
    %v171 = vadd.f32 %v52, %v170
    %172 = vmatmul.f32.gmra.mxu0 %v61
    %v173 = vpop.f32.mrf.mxu0
    %v174 = vadd.f32 %v52, %v173
    %175 = vmatmul.f32.gmra.mxu0 %v64
    %v176 = vpop.f32.mrf.mxu0
    %v177 = vadd.f32 %v52, %v176
    %178 = vmatmul.f32.gmra.mxu0 %v67
    %v179 = vpop.f32.mrf.mxu0
    %v180 = vadd.f32 %v52, %v179
    %181 = vmatmul.f32.gmra.mxu0 %v70
    %v182 = vpop.f32.mrf.mxu0
    %v183 = vadd.f32 %v52, %v182
    %184 = vmatmul.f32.gmra.mxu0 %v73
    %v185 = vpop.f32.mrf.mxu0
    %v186 = vadd.f32 %v52, %v185
    %187 = vmatmul.f32.gmra.mxu0 %v76
    %v188 = vpop.f32.mrf.mxu0
    %v189 = vadd.f32 %v52, %v188
    %190 = vmatmul.f32.gmra.mxu0 %v79
    %v191 = vpop.f32.mrf.mxu0
    %v192 = vadd.f32 %v52, %v191
    %193 = vmatmul.f32.gmra.mxu0 %v82
    %v194 = vpop.f32.mrf.mxu0
    %v195 = vadd.f32 %v52, %v194
    %196 = vmatmul.f32.gmra.mxu0 %v85
    %v197 = vpop.f32.mrf.mxu0
    %v198 = vadd.f32 %v52, %v197
    %199 = vmatmul.f32.gmra.mxu0 %v88
    %v200 = vpop.f32.mrf.mxu0
    %v201 = vadd.f32 %v52, %v200
    %202 = vmatmul.f32.gmra.mxu0 %v91
    %v203 = vpop.f32.mrf.mxu0
    %v204 = vadd.f32 %v52, %v203
    %205 = vmatmul.f32.gmra.mxu0 %v94
    %v206 = vpop.f32.mrf.mxu0
    %v207 = vadd.f32 %v52, %v206
    %208 = vmatmul.f32.gmra.mxu0 %v97
    %v209 = vpop.f32.mrf.mxu0
    %v210 = vadd.f32 %v52, %v209
    %211 = vmatmul.f32.gmra.mxu0 %v100
    %v212 = vpop.f32.mrf.mxu0
    %v213 = vadd.f32 %v52, %v212
    %214 = vmatmul.f32.gmra.mxu0 %v103
    %v215 = vpop.f32.mrf.mxu0
    %v216 = vadd.f32 %v52, %v215
    %217 = vmatmul.f32.gmra.mxu0 %v106
    %v218 = vpop.f32.mrf.mxu0
    %v219 = vadd.f32 %v52, %v218
    %220 = vmatmul.f32.gmra.mxu0 %v109
    %v221 = vpop.f32.mrf.mxu0
    %v222 = vadd.f32 %v52, %v221
    %223 = vmatmul.f32.gmra.mxu0 %v112
    %v224 = vpop.f32.mrf.mxu0
    %v225 = vadd.f32 %v52, %v224
    %226 = vmatmul.f32.gmra.mxu0 %v115
    %v227 = vpop.f32.mrf.mxu0
    %v228 = vadd.f32 %v52, %v227
    %229 = vmatmul.f32.gmra.mxu0 %v118
    %v230 = vpop.f32.mrf.mxu0
    %v231 = vadd.f32 %v52, %v230
    %232 = vmatmul.f32.gmra.mxu0 %v121
    %v233 = vpop.f32.mrf.mxu0
    %v234 = vadd.f32 %v52, %v233
    %235 = vmatmul.f32.gmra.mxu0 %v124
    %v236 = vpop.f32.mrf.mxu0
    %v237 = vadd.f32 %v52, %v236
    %238 = vmatmul.f32.gmra.mxu0 %v127
    %v239 = vpop.f32.mrf.mxu0
    %v240 = vadd.f32 %v52, %v239
    %241 = vmatmul.f32.gmra.mxu0 %v130
    %v242 = vpop.f32.mrf.mxu0
    %v243 = vadd.f32 %v52, %v242
    %244 = vmatmul.f32.gmra.mxu0 %v133
    %v245 = vpop.f32.mrf.mxu0
    %v246 = vadd.f32 %v52, %v245
    %247 = vmatmul.f32.gmra.mxu0 %v136
    %v248 = vpop.f32.mrf.mxu0
    %v249 = vadd.f32 %v52, %v248
    %250 = vmatmul.f32.gmra.mxu0 %v139
    %v251 = vpop.f32.mrf.mxu0
    %v252 = vadd.f32 %v52, %v251
    %253 = vmatmul.f32.gmra.mxu0 %v142
    %v254 = vpop.f32.mrf.mxu0
    %v255 = vadd.f32 %v52, %v254
    %256 = vmatmul.f32.gmra.mxu0 %v145
    %v257 = vpop.f32.mrf.mxu0
    %v258 = vadd.f32 %v52, %v257
    %259 = vmatmul.f32.gmra.mxu0 %v148
    %v260 = vpop.f32.mrf.mxu0
    %v261 = vadd.f32 %v52, %v260
    %262 = vdwg.mxu0
    %v263 = vmul.f32 %v168, %v168
    %v264 = vmul.f32 %v171, %v171
    %v265 = vmul.f32 %v174, %v174
    %v266 = vmul.f32 %v177, %v177
    %v267 = vmul.f32 %v180, %v180
    %v268 = vmul.f32 %v183, %v183
    %v269 = vmul.f32 %v186, %v186
    %v270 = vmul.f32 %v189, %v189
    %v271 = vmul.f32 %v192, %v192
    %v272 = vmul.f32 %v195, %v195
    %v273 = vmul.f32 %v198, %v198
    %v274 = vmul.f32 %v201, %v201
    %v275 = vmul.f32 %v204, %v204
    %v276 = vmul.f32 %v207, %v207
    %v277 = vmul.f32 %v210, %v210
    %v278 = vmul.f32 %v213, %v213
    %v279 = vmul.f32 %v216, %v216
    %v280 = vmul.f32 %v219, %v219
    %v281 = vmul.f32 %v222, %v222
    %v282 = vmul.f32 %v225, %v225
    %v283 = vmul.f32 %v228, %v228
    %v284 = vmul.f32 %v231, %v231
    %v285 = vmul.f32 %v234, %v234
    %v286 = vmul.f32 %v237, %v237
    %v287 = vmul.f32 %v240, %v240
    %v288 = vmul.f32 %v243, %v243
    %v289 = vmul.f32 %v246, %v246
    %v290 = vmul.f32 %v249, %v249
    %v291 = vmul.f32 %v252, %v252
    %v292 = vmul.f32 %v255, %v255
    %v293 = vmul.f32 %v258, %v258
    %v294 = vmul.f32 %v261, %v261
    %295 = vadd.xlane.f32.xlu0 %v263
    %v296 = vpop.xlane.xlu0 %295
    %297 = vadd.xlane.f32.xlu0 %v264
    %v298 = vpop.xlane.xlu0 %297
    %299 = vadd.xlane.f32.xlu0 %v265
    %v300 = vpop.xlane.xlu0 %299
    %301 = vadd.xlane.f32.xlu0 %v266
    %v302 = vpop.xlane.xlu0 %301
    %303 = vadd.xlane.f32.xlu0 %v267
    %v304 = vpop.xlane.xlu0 %303
    %305 = vadd.xlane.f32.xlu0 %v268
    %v306 = vpop.xlane.xlu0 %305
    %307 = vadd.xlane.f32.xlu0 %v269
    %v308 = vpop.xlane.xlu0 %307
    %309 = vadd.xlane.f32.xlu0 %v270
    %v310 = vpop.xlane.xlu0 %309
    %311 = vadd.xlane.f32.xlu0 %v271
    %v312 = vpop.xlane.xlu0 %311
    %313 = vadd.xlane.f32.xlu0 %v272
    %v314 = vpop.xlane.xlu0 %313
    %315 = vadd.xlane.f32.xlu0 %v273
    %v316 = vpop.xlane.xlu0 %315
    %317 = vadd.xlane.f32.xlu0 %v274
    %v318 = vpop.xlane.xlu0 %317
    %319 = vadd.xlane.f32.xlu0 %v275
    %v320 = vpop.xlane.xlu0 %319
    %321 = vadd.xlane.f32.xlu0 %v276
    %v322 = vpop.xlane.xlu0 %321
    %323 = vadd.xlane.f32.xlu0 %v277
    %v324 = vpop.xlane.xlu0 %323
    %325 = vadd.xlane.f32.xlu0 %v278
    %v326 = vpop.xlane.xlu0 %325
    %327 = vadd.xlane.f32.xlu0 %v279
    %v328 = vpop.xlane.xlu0 %327
    %329 = vadd.xlane.f32.xlu0 %v280
    %v330 = vpop.xlane.xlu0 %329
    %331 = vadd.xlane.f32.xlu0 %v281
    %v332 = vpop.xlane.xlu0 %331
    %333 = vadd.xlane.f32.xlu0 %v282
    %v334 = vpop.xlane.xlu0 %333
    %335 = vadd.xlane.f32.xlu0 %v283
    %v336 = vpop.xlane.xlu0 %335
    %337 = vadd.xlane.f32.xlu0 %v284
    %v338 = vpop.xlane.xlu0 %337
    %339 = vadd.xlane.f32.xlu0 %v285
    %v340 = vpop.xlane.xlu0 %339
    %341 = vadd.xlane.f32.xlu0 %v286
    %v342 = vpop.xlane.xlu0 %341
    %343 = vadd.xlane.f32.xlu0 %v287
    %v344 = vpop.xlane.xlu0 %343
    %345 = vadd.xlane.f32.xlu0 %v288
    %v346 = vpop.xlane.xlu0 %345
    %347 = vadd.xlane.f32.xlu0 %v289
    %v348 = vpop.xlane.xlu0 %347
    %349 = vadd.xlane.f32.xlu0 %v290
    %v350 = vpop.xlane.xlu0 %349
    %351 = vadd.xlane.f32.xlu0 %v291
    %v352 = vpop.xlane.xlu0 %351
    %353 = vadd.xlane.f32.xlu0 %v292
    %v354 = vpop.xlane.xlu0 %353
    %355 = vadd.xlane.f32.xlu0 %v293
    %v356 = vpop.xlane.xlu0 %355
    %357 = vadd.xlane.f32.xlu0 %v294
    %v358 = vpop.xlane.xlu0 %357
    %v359 = vrcp.pop 128.0
    %v360 = vmul.f32 128.0, %v359
    %v361 = vsub.f32 1.0, %v360
    %v362 = vmul.f32 %v359, %v361
    %v363 = vadd.f32 %v359, %v362
    %vm364 = vweird.f32 %v359
    %v365 = vsel %vm364, %v359, %v363
    %v366 = vmul.f32 %v296, %v365
    %v367 = vmul.f32 %v298, %v365
    %v368 = vmul.f32 %v300, %v365
    %v369 = vmul.f32 %v302, %v365
    %v370 = vmul.f32 %v304, %v365
    %v371 = vmul.f32 %v306, %v365
    %v372 = vmul.f32 %v308, %v365
    %v373 = vmul.f32 %v310, %v365
    %v374 = vmul.f32 %v312, %v365
    %v375 = vmul.f32 %v314, %v365
    %v376 = vmul.f32 %v316, %v365
    %v377 = vmul.f32 %v318, %v365
    %v378 = vmul.f32 %v320, %v365
    %v379 = vmul.f32 %v322, %v365
    %v380 = vmul.f32 %v324, %v365
    %v381 = vmul.f32 %v326, %v365
    %v382 = vmul.f32 %v328, %v365
    %v383 = vmul.f32 %v330, %v365
    %v384 = vmul.f32 %v332, %v365
    %v385 = vmul.f32 %v334, %v365
    %v386 = vmul.f32 %v336, %v365
    %v387 = vmul.f32 %v338, %v365
    %v388 = vmul.f32 %v340, %v365
    %v389 = vmul.f32 %v342, %v365
    %v390 = vmul.f32 %v344, %v365
    %v391 = vmul.f32 %v346, %v365
    %v392 = vmul.f32 %v348, %v365
    %v393 = vmul.f32 %v350, %v365
    %v394 = vmul.f32 %v352, %v365
    %v395 = vmul.f32 %v354, %v365
    %v396 = vmul.f32 %v356, %v365
    %v397 = vmul.f32 %v358, %v365
    %v398 = vadd.f32 %v366, 1e-05
    %v399 = vadd.f32 %v367, 1e-05
    %v400 = vadd.f32 %v368, 1e-05
    %v401 = vadd.f32 %v369, 1e-05
    %v402 = vadd.f32 %v370, 1e-05
    %v403 = vadd.f32 %v371, 1e-05
    %v404 = vadd.f32 %v372, 1e-05
    %v405 = vadd.f32 %v373, 1e-05
    %v406 = vadd.f32 %v374, 1e-05
    %v407 = vadd.f32 %v375, 1e-05
    %v408 = vadd.f32 %v376, 1e-05
    %v409 = vadd.f32 %v377, 1e-05
    %v410 = vadd.f32 %v378, 1e-05
    %v411 = vadd.f32 %v379, 1e-05
    %v412 = vadd.f32 %v380, 1e-05
    %v413 = vadd.f32 %v381, 1e-05
    %v414 = vadd.f32 %v382, 1e-05
    %v415 = vadd.f32 %v383, 1e-05
    %v416 = vadd.f32 %v384, 1e-05
    %v417 = vadd.f32 %v385, 1e-05
    %v418 = vadd.f32 %v386, 1e-05
    %v419 = vadd.f32 %v387, 1e-05
    %v420 = vadd.f32 %v388, 1e-05
    %v421 = vadd.f32 %v389, 1e-05
    %v422 = vadd.f32 %v390, 1e-05
    %v423 = vadd.f32 %v391, 1e-05
    %v424 = vadd.f32 %v392, 1e-05
    %v425 = vadd.f32 %v393, 1e-05
    %v426 = vadd.f32 %v394, 1e-05
    %v427 = vadd.f32 %v395, 1e-05
    %v428 = vadd.f32 %v396, 1e-05
    %v429 = vadd.f32 %v397, 1e-05
    %v430 = vrsqrt.pop %v398
    %v431 = vmul.f32 %v430, %v398
    %v432 = vmul.f32 %v431, %v430
    %v433 = vmul.f32 0.5, %v432
    %v434 = vsub.f32 1.5, %v433
    %v435 = vmul.f32 %v430, %v434
    %vm436 = vweird.f32 %v398
    %vm437 = vweird.f32 %v430
    %vm438 = vmor %vm436, %vm437
    %v439 = vsel %vm438, %v430, %v435
    %v440 = vrsqrt.pop %v399
    %v441 = vmul.f32 %v440, %v399
    %v442 = vmul.f32 %v441, %v440
    %v443 = vmul.f32 0.5, %v442
    %v444 = vsub.f32 1.5, %v443
    %v445 = vmul.f32 %v440, %v444
    %vm446 = vweird.f32 %v399
    %vm447 = vweird.f32 %v440
    %vm448 = vmor %vm446, %vm447
    %v449 = vsel %vm448, %v440, %v445
    %v450 = vrsqrt.pop %v400
    %v451 = vmul.f32 %v450, %v400
    %v452 = vmul.f32 %v451, %v450
    %v453 = vmul.f32 0.5, %v452
    %v454 = vsub.f32 1.5, %v453
    %v455 = vmul.f32 %v450, %v454
    %vm456 = vweird.f32 %v400
    %vm457 = vweird.f32 %v450
    %vm458 = vmor %vm456, %vm457
    %v459 = vsel %vm458, %v450, %v455
    %v460 = vrsqrt.pop %v401
    %v461 = vmul.f32 %v460, %v401
    %v462 = vmul.f32 %v461, %v460
    %v463 = vmul.f32 0.5, %v462
    %v464 = vsub.f32 1.5, %v463
    %v465 = vmul.f32 %v460, %v464
    %vm466 = vweird.f32 %v401
    %vm467 = vweird.f32 %v460
    %vm468 = vmor %vm466, %vm467
    %v469 = vsel %vm468, %v460, %v465
    %v470 = vrsqrt.pop %v402
    %v471 = vmul.f32 %v470, %v402
    %v472 = vmul.f32 %v471, %v470
    %v473 = vmul.f32 0.5, %v472
    %v474 = vsub.f32 1.5, %v473
    %v475 = vmul.f32 %v470, %v474
    %vm476 = vweird.f32 %v402
    %vm477 = vweird.f32 %v470
    %vm478 = vmor %vm476, %vm477
    %v479 = vsel %vm478, %v470, %v475
    %v480 = vrsqrt.pop %v403
    %v481 = vmul.f32 %v480, %v403
    %v482 = vmul.f32 %v481, %v480
    %v483 = vmul.f32 0.5, %v482
    %v484 = vsub.f32 1.5, %v483
    %v485 = vmul.f32 %v480, %v484
    %vm486 = vweird.f32 %v403
    %vm487 = vweird.f32 %v480
    %vm488 = vmor %vm486, %vm487
    %v489 = vsel %vm488, %v480, %v485
    %v490 = vrsqrt.pop %v404
    %v491 = vmul.f32 %v490, %v404
    %v492 = vmul.f32 %v491, %v490
    %v493 = vmul.f32 0.5, %v492
    %v494 = vsub.f32 1.5, %v493
    %v495 = vmul.f32 %v490, %v494
    %vm496 = vweird.f32 %v404
    %vm497 = vweird.f32 %v490
    %vm498 = vmor %vm496, %vm497
    %v499 = vsel %vm498, %v490, %v495
    %v500 = vrsqrt.pop %v405
    %v501 = vmul.f32 %v500, %v405
    %v502 = vmul.f32 %v501, %v500
    %v503 = vmul.f32 0.5, %v502
    %v504 = vsub.f32 1.5, %v503
    %v505 = vmul.f32 %v500, %v504
    %vm506 = vweird.f32 %v405
    %vm507 = vweird.f32 %v500
    %vm508 = vmor %vm506, %vm507
    %v509 = vsel %vm508, %v500, %v505
    %v510 = vrsqrt.pop %v406
    %v511 = vmul.f32 %v510, %v406
    %v512 = vmul.f32 %v511, %v510
    %v513 = vmul.f32 0.5, %v512
    %v514 = vsub.f32 1.5, %v513
    %v515 = vmul.f32 %v510, %v514
    %vm516 = vweird.f32 %v406
    %vm517 = vweird.f32 %v510
    %vm518 = vmor %vm516, %vm517
    %v519 = vsel %vm518, %v510, %v515
    %v520 = vrsqrt.pop %v407
    %v521 = vmul.f32 %v520, %v407
    %v522 = vmul.f32 %v521, %v520
    %v523 = vmul.f32 0.5, %v522
    %v524 = vsub.f32 1.5, %v523
    %v525 = vmul.f32 %v520, %v524
    %vm526 = vweird.f32 %v407
    %vm527 = vweird.f32 %v520
    %vm528 = vmor %vm526, %vm527
    %v529 = vsel %vm528, %v520, %v525
    %v530 = vrsqrt.pop %v408
    %v531 = vmul.f32 %v530, %v408
    %v532 = vmul.f32 %v531, %v530
    %v533 = vmul.f32 0.5, %v532
    %v534 = vsub.f32 1.5, %v533
    %v535 = vmul.f32 %v530, %v534
    %vm536 = vweird.f32 %v408
    %vm537 = vweird.f32 %v530
    %vm538 = vmor %vm536, %vm537
    %v539 = vsel %vm538, %v530, %v535
    %v540 = vrsqrt.pop %v409
    %v541 = vmul.f32 %v540, %v409
    %v542 = vmul.f32 %v541, %v540
    %v543 = vmul.f32 0.5, %v542
    %v544 = vsub.f32 1.5, %v543
    %v545 = vmul.f32 %v540, %v544
    %vm546 = vweird.f32 %v409
    %vm547 = vweird.f32 %v540
    %vm548 = vmor %vm546, %vm547
    %v549 = vsel %vm548, %v540, %v545
    %v550 = vrsqrt.pop %v410
    %v551 = vmul.f32 %v550, %v410
    %v552 = vmul.f32 %v551, %v550
    %v553 = vmul.f32 0.5, %v552
    %v554 = vsub.f32 1.5, %v553
    %v555 = vmul.f32 %v550, %v554
    %vm556 = vweird.f32 %v410
    %vm557 = vweird.f32 %v550
    %vm558 = vmor %vm556, %vm557
    %v559 = vsel %vm558, %v550, %v555
    %v560 = vrsqrt.pop %v411
    %v561 = vmul.f32 %v560, %v411
    %v562 = vmul.f32 %v561, %v560
    %v563 = vmul.f32 0.5, %v562
    %v564 = vsub.f32 1.5, %v563
    %v565 = vmul.f32 %v560, %v564
    %vm566 = vweird.f32 %v411
    %vm567 = vweird.f32 %v560
    %vm568 = vmor %vm566, %vm567
    %v569 = vsel %vm568, %v560, %v565
    %v570 = vrsqrt.pop %v412
    %v571 = vmul.f32 %v570, %v412
    %v572 = vmul.f32 %v571, %v570
    %v573 = vmul.f32 0.5, %v572
    %v574 = vsub.f32 1.5, %v573
    %v575 = vmul.f32 %v570, %v574
    %vm576 = vweird.f32 %v412
    %vm577 = vweird.f32 %v570
    %vm578 = vmor %vm576, %vm577
    %v579 = vsel %vm578, %v570, %v575
    %v580 = vrsqrt.pop %v413
    %v581 = vmul.f32 %v580, %v413
    %v582 = vmul.f32 %v581, %v580
    %v583 = vmul.f32 0.5, %v582
    %v584 = vsub.f32 1.5, %v583
    %v585 = vmul.f32 %v580, %v584
    %vm586 = vweird.f32 %v413
    %vm587 = vweird.f32 %v580
    %vm588 = vmor %vm586, %vm587
    %v589 = vsel %vm588, %v580, %v585
    %v590 = vrsqrt.pop %v414
    %v591 = vmul.f32 %v590, %v414
    %v592 = vmul.f32 %v591, %v590
    %v593 = vmul.f32 0.5, %v592
    %v594 = vsub.f32 1.5, %v593
    %v595 = vmul.f32 %v590, %v594
    %vm596 = vweird.f32 %v414
    %vm597 = vweird.f32 %v590
    %vm598 = vmor %vm596, %vm597
    %v599 = vsel %vm598, %v590, %v595
    %v600 = vrsqrt.pop %v415
    %v601 = vmul.f32 %v600, %v415
    %v602 = vmul.f32 %v601, %v600
    %v603 = vmul.f32 0.5, %v602
    %v604 = vsub.f32 1.5, %v603
    %v605 = vmul.f32 %v600, %v604
    %vm606 = vweird.f32 %v415
    %vm607 = vweird.f32 %v600
    %vm608 = vmor %vm606, %vm607
    %v609 = vsel %vm608, %v600, %v605
    %v610 = vrsqrt.pop %v416
    %v611 = vmul.f32 %v610, %v416
    %v612 = vmul.f32 %v611, %v610
    %v613 = vmul.f32 0.5, %v612
    %v614 = vsub.f32 1.5, %v613
    %v615 = vmul.f32 %v610, %v614
    %vm616 = vweird.f32 %v416
    %vm617 = vweird.f32 %v610
    %vm618 = vmor %vm616, %vm617
    %v619 = vsel %vm618, %v610, %v615
    %v620 = vrsqrt.pop %v417
    %v621 = vmul.f32 %v620, %v417
    %v622 = vmul.f32 %v621, %v620
    %v623 = vmul.f32 0.5, %v622
    %v624 = vsub.f32 1.5, %v623
    %v625 = vmul.f32 %v620, %v624
    %vm626 = vweird.f32 %v417
    %vm627 = vweird.f32 %v620
    %vm628 = vmor %vm626, %vm627
    %v629 = vsel %vm628, %v620, %v625
    %v630 = vrsqrt.pop %v418
    %v631 = vmul.f32 %v630, %v418
    %v632 = vmul.f32 %v631, %v630
    %v633 = vmul.f32 0.5, %v632
    %v634 = vsub.f32 1.5, %v633
    %v635 = vmul.f32 %v630, %v634
    %vm636 = vweird.f32 %v418
    %vm637 = vweird.f32 %v630
    %vm638 = vmor %vm636, %vm637
    %v639 = vsel %vm638, %v630, %v635
    %v640 = vrsqrt.pop %v419
    %v641 = vmul.f32 %v640, %v419
    %v642 = vmul.f32 %v641, %v640
    %v643 = vmul.f32 0.5, %v642
    %v644 = vsub.f32 1.5, %v643
    %v645 = vmul.f32 %v640, %v644
    %vm646 = vweird.f32 %v419
    %vm647 = vweird.f32 %v640
    %vm648 = vmor %vm646, %vm647
    %v649 = vsel %vm648, %v640, %v645
    %v650 = vrsqrt.pop %v420
    %v651 = vmul.f32 %v650, %v420
    %v652 = vmul.f32 %v651, %v650
    %v653 = vmul.f32 0.5, %v652
    %v654 = vsub.f32 1.5, %v653
    %v655 = vmul.f32 %v650, %v654
    %vm656 = vweird.f32 %v420
    %vm657 = vweird.f32 %v650
    %vm658 = vmor %vm656, %vm657
    %v659 = vsel %vm658, %v650, %v655
    %v660 = vrsqrt.pop %v421
    %v661 = vmul.f32 %v660, %v421
    %v662 = vmul.f32 %v661, %v660
    %v663 = vmul.f32 0.5, %v662
    %v664 = vsub.f32 1.5, %v663
    %v665 = vmul.f32 %v660, %v664
    %vm666 = vweird.f32 %v421
    %vm667 = vweird.f32 %v660
    %vm668 = vmor %vm666, %vm667
    %v669 = vsel %vm668, %v660, %v665
    %v670 = vrsqrt.pop %v422
    %v671 = vmul.f32 %v670, %v422
    %v672 = vmul.f32 %v671, %v670
    %v673 = vmul.f32 0.5, %v672
    %v674 = vsub.f32 1.5, %v673
    %v675 = vmul.f32 %v670, %v674
    %vm676 = vweird.f32 %v422
    %vm677 = vweird.f32 %v670
    %vm678 = vmor %vm676, %vm677
    %v679 = vsel %vm678, %v670, %v675
    %v680 = vrsqrt.pop %v423
    %v681 = vmul.f32 %v680, %v423
    %v682 = vmul.f32 %v681, %v680
    %v683 = vmul.f32 0.5, %v682
    %v684 = vsub.f32 1.5, %v683
    %v685 = vmul.f32 %v680, %v684
    %vm686 = vweird.f32 %v423
    %vm687 = vweird.f32 %v680
    %vm688 = vmor %vm686, %vm687
    %v689 = vsel %vm688, %v680, %v685
    %v690 = vrsqrt.pop %v424
    %v691 = vmul.f32 %v690, %v424
    %v692 = vmul.f32 %v691, %v690
    %v693 = vmul.f32 0.5, %v692
    %v694 = vsub.f32 1.5, %v693
    %v695 = vmul.f32 %v690, %v694
    %vm696 = vweird.f32 %v424
    %vm697 = vweird.f32 %v690
    %vm698 = vmor %vm696, %vm697
    %v699 = vsel %vm698, %v690, %v695
    %v700 = vrsqrt.pop %v425
    %v701 = vmul.f32 %v700, %v425
    %v702 = vmul.f32 %v701, %v700
    %v703 = vmul.f32 0.5, %v702
    %v704 = vsub.f32 1.5, %v703
    %v705 = vmul.f32 %v700, %v704
    %vm706 = vweird.f32 %v425
    %vm707 = vweird.f32 %v700
    %vm708 = vmor %vm706, %vm707
    %v709 = vsel %vm708, %v700, %v705
    %v710 = vrsqrt.pop %v426
    %v711 = vmul.f32 %v710, %v426
    %v712 = vmul.f32 %v711, %v710
    %v713 = vmul.f32 0.5, %v712
    %v714 = vsub.f32 1.5, %v713
    %v715 = vmul.f32 %v710, %v714
    %vm716 = vweird.f32 %v426
    %vm717 = vweird.f32 %v710
    %vm718 = vmor %vm716, %vm717
    %v719 = vsel %vm718, %v710, %v715
    %v720 = vrsqrt.pop %v427
    %v721 = vmul.f32 %v720, %v427
    %v722 = vmul.f32 %v721, %v720
    %v723 = vmul.f32 0.5, %v722
    %v724 = vsub.f32 1.5, %v723
    %v725 = vmul.f32 %v720, %v724
    %vm726 = vweird.f32 %v427
    %vm727 = vweird.f32 %v720
    %vm728 = vmor %vm726, %vm727
    %v729 = vsel %vm728, %v720, %v725
    %v730 = vrsqrt.pop %v428
    %v731 = vmul.f32 %v730, %v428
    %v732 = vmul.f32 %v731, %v730
    %v733 = vmul.f32 0.5, %v732
    %v734 = vsub.f32 1.5, %v733
    %v735 = vmul.f32 %v730, %v734
    %vm736 = vweird.f32 %v428
    %vm737 = vweird.f32 %v730
    %vm738 = vmor %vm736, %vm737
    %v739 = vsel %vm738, %v730, %v735
    %v740 = vrsqrt.pop %v429
    %v741 = vmul.f32 %v740, %v429
    %v742 = vmul.f32 %v741, %v740
    %v743 = vmul.f32 0.5, %v742
    %v744 = vsub.f32 1.5, %v743
    %v745 = vmul.f32 %v740, %v744
    %vm746 = vweird.f32 %v429
    %vm747 = vweird.f32 %v740
    %vm748 = vmor %vm746, %vm747
    %v749 = vsel %vm748, %v740, %v745
    %v750 = vmul.f32 %v168, %v439
    %v751 = vmul.f32 %v171, %v449
    %v752 = vmul.f32 %v174, %v459
    %v753 = vmul.f32 %v177, %v469
    %v754 = vmul.f32 %v180, %v479
    %v755 = vmul.f32 %v183, %v489
    %v756 = vmul.f32 %v186, %v499
    %v757 = vmul.f32 %v189, %v509
    %v758 = vmul.f32 %v192, %v519
    %v759 = vmul.f32 %v195, %v529
    %v760 = vmul.f32 %v198, %v539
    %v761 = vmul.f32 %v201, %v549
    %v762 = vmul.f32 %v204, %v559
    %v763 = vmul.f32 %v207, %v569
    %v764 = vmul.f32 %v210, %v579
    %v765 = vmul.f32 %v213, %v589
    %v766 = vmul.f32 %v216, %v599
    %v767 = vmul.f32 %v219, %v609
    %v768 = vmul.f32 %v222, %v619
    %v769 = vmul.f32 %v225, %v629
    %v770 = vmul.f32 %v228, %v639
    %v771 = vmul.f32 %v231, %v649
    %v772 = vmul.f32 %v234, %v659
    %v773 = vmul.f32 %v237, %v669
    %v774 = vmul.f32 %v240, %v679
    %v775 = vmul.f32 %v243, %v689
    %v776 = vmul.f32 %v246, %v699
    %v777 = vmul.f32 %v249, %v709
    %v778 = vmul.f32 %v252, %v719
    %v779 = vmul.f32 %v255, %v729
    %v780 = vmul.f32 %v258, %v739
    %v781 = vmul.f32 %v261, %v749
    %v782 = vld [vmem:[%s2 + $0x1] sm:$0x1]
    %v783 = vperm.slane %v782, 0
    %v784 = vmul.f32 %v750, %v783
    %v785 = vmul.f32 %v751, %v783
    %v786 = vmul.f32 %v752, %v783
    %v787 = vmul.f32 %v753, %v783
    %v788 = vmul.f32 %v754, %v783
    %v789 = vmul.f32 %v755, %v783
    %v790 = vmul.f32 %v756, %v783
    %v791 = vmul.f32 %v757, %v783
    %v792 = vmul.f32 %v758, %v783
    %v793 = vmul.f32 %v759, %v783
    %v794 = vmul.f32 %v760, %v783
    %v795 = vmul.f32 %v761, %v783
    %v796 = vmul.f32 %v762, %v783
    %v797 = vmul.f32 %v763, %v783
    %v798 = vmul.f32 %v764, %v783
    %v799 = vmul.f32 %v765, %v783
    %v800 = vmul.f32 %v766, %v783
    %v801 = vmul.f32 %v767, %v783
    %v802 = vmul.f32 %v768, %v783
    %v803 = vmul.f32 %v769, %v783
    %v804 = vmul.f32 %v770, %v783
    %v805 = vmul.f32 %v771, %v783
    %v806 = vmul.f32 %v772, %v783
    %v807 = vmul.f32 %v773, %v783
    %v808 = vmul.f32 %v774, %v783
    %v809 = vmul.f32 %v775, %v783
    %v810 = vmul.f32 %v776, %v783
    %v811 = vmul.f32 %v777, %v783
    %v812 = vmul.f32 %v778, %v783
    %v813 = vmul.f32 %v779, %v783
    %v814 = vmul.f32 %v780, %v783
    %v815 = vmul.f32 %v781, %v783
    %v816 = vmax.f32 %v784, %v785
    %v817 = vmax.f32 %v786, %v787
    %v818 = vmax.f32 %v788, %v789
    %v819 = vmax.f32 %v790, %v791
    %v820 = vmax.f32 %v792, %v793
    %v821 = vmax.f32 %v794, %v795
    %v822 = vmax.f32 %v796, %v797
    %v823 = vmax.f32 %v798, %v799
    %v824 = vmax.f32 %v800, %v801
    %v825 = vmax.f32 %v802, %v803
    %v826 = vmax.f32 %v804, %v805
    %v827 = vmax.f32 %v806, %v807
    %v828 = vmax.f32 %v808, %v809
    %v829 = vmax.f32 %v810, %v811
    %v830 = vmax.f32 %v812, %v813
    %v831 = vmax.f32 %v814, %v815
    %v832 = vrot.slane %v816, 4
    %v833 = vmax.f32 %v816, %v832
    %v834 = vrot.slane %v833, 2
    %v835 = vmax.f32 %v833, %v834
    %v836 = vrot.slane %v835, 1
    %v837 = vmax.f32 %v835, %v836
    %v838 = vrot.slane %v817, 4
    %v839 = vmax.f32 %v817, %v838
    %v840 = vrot.slane %v839, 2
    %v841 = vmax.f32 %v839, %v840
    %v842 = vrot.slane %v841, 1
    %v843 = vmax.f32 %v841, %v842
    %v844 = vrot.slane %v818, 4
    %v845 = vmax.f32 %v818, %v844
    %v846 = vrot.slane %v845, 2
    %v847 = vmax.f32 %v845, %v846
    %v848 = vrot.slane %v847, 1
    %v849 = vmax.f32 %v847, %v848
    %v850 = vrot.slane %v819, 4
    %v851 = vmax.f32 %v819, %v850
    %v852 = vrot.slane %v851, 2
    %v853 = vmax.f32 %v851, %v852
    %v854 = vrot.slane %v853, 1
    %v855 = vmax.f32 %v853, %v854
    %v856 = vrot.slane %v820, 4
    %v857 = vmax.f32 %v820, %v856
    %v858 = vrot.slane %v857, 2
    %v859 = vmax.f32 %v857, %v858
    %v860 = vrot.slane %v859, 1
    %v861 = vmax.f32 %v859, %v860
    %v862 = vrot.slane %v821, 4
    %v863 = vmax.f32 %v821, %v862
    %v864 = vrot.slane %v863, 2
    %v865 = vmax.f32 %v863, %v864
    %v866 = vrot.slane %v865, 1
    %v867 = vmax.f32 %v865, %v866
    %v868 = vrot.slane %v822, 4
    %v869 = vmax.f32 %v822, %v868
    %v870 = vrot.slane %v869, 2
    %v871 = vmax.f32 %v869, %v870
    %v872 = vrot.slane %v871, 1
    %v873 = vmax.f32 %v871, %v872
    %v874 = vrot.slane %v823, 4
    %v875 = vmax.f32 %v823, %v874
    %v876 = vrot.slane %v875, 2
    %v877 = vmax.f32 %v875, %v876
    %v878 = vrot.slane %v877, 1
    %v879 = vmax.f32 %v877, %v878
    %v880 = vrot.slane %v824, 4
    %v881 = vmax.f32 %v824, %v880
    %v882 = vrot.slane %v881, 2
    %v883 = vmax.f32 %v881, %v882
    %v884 = vrot.slane %v883, 1
    %v885 = vmax.f32 %v883, %v884
    %v886 = vrot.slane %v825, 4
    %v887 = vmax.f32 %v825, %v886
    %v888 = vrot.slane %v887, 2
    %v889 = vmax.f32 %v887, %v888
    %v890 = vrot.slane %v889, 1
    %v891 = vmax.f32 %v889, %v890
    %v892 = vrot.slane %v826, 4
    %v893 = vmax.f32 %v826, %v892
    %v894 = vrot.slane %v893, 2
    %v895 = vmax.f32 %v893, %v894
    %v896 = vrot.slane %v895, 1
    %v897 = vmax.f32 %v895, %v896
    %v898 = vrot.slane %v827, 4
    %v899 = vmax.f32 %v827, %v898
    %v900 = vrot.slane %v899, 2
    %v901 = vmax.f32 %v899, %v900
    %v902 = vrot.slane %v901, 1
    %v903 = vmax.f32 %v901, %v902
    %v904 = vrot.slane %v828, 4
    %v905 = vmax.f32 %v828, %v904
    %v906 = vrot.slane %v905, 2
    %v907 = vmax.f32 %v905, %v906
    %v908 = vrot.slane %v907, 1
    %v909 = vmax.f32 %v907, %v908
    %v910 = vrot.slane %v829, 4
    %v911 = vmax.f32 %v829, %v910
    %v912 = vrot.slane %v911, 2
    %v913 = vmax.f32 %v911, %v912
    %v914 = vrot.slane %v913, 1
    %v915 = vmax.f32 %v913, %v914
    %v916 = vrot.slane %v830, 4
    %v917 = vmax.f32 %v830, %v916
    %v918 = vrot.slane %v917, 2
    %v919 = vmax.f32 %v917, %v918
    %v920 = vrot.slane %v919, 1
    %v921 = vmax.f32 %v919, %v920
    %v922 = vrot.slane %v831, 4
    %v923 = vmax.f32 %v831, %v922
    %v924 = vrot.slane %v923, 2
    %v925 = vmax.f32 %v923, %v924
    %v926 = vrot.slane %v925, 1
    %v927 = vmax.f32 %v925, %v926
    %v928 = vld [vmem:[%s2 + $0x2] sm:$0x1]
    %v929 = vperm.slane %v928, 0
    %v930 = vadd.f32 %v837, %v929
    %v931 = vadd.f32 %v843, %v929
    %v932 = vadd.f32 %v849, %v929
    %v933 = vadd.f32 %v855, %v929
    %v934 = vadd.f32 %v861, %v929
    %v935 = vadd.f32 %v867, %v929
    %v936 = vadd.f32 %v873, %v929
    %v937 = vadd.f32 %v879, %v929
    %v938 = vadd.f32 %v885, %v929
    %v939 = vadd.f32 %v891, %v929
    %v940 = vadd.f32 %v897, %v929
    %v941 = vadd.f32 %v903, %v929
    %v942 = vadd.f32 %v909, %v929
    %v943 = vadd.f32 %v915, %v929
    %v944 = vadd.f32 %v921, %v929
    %v945 = vadd.f32 %v927, %v929
    %v946 = vmax.f32 %v930, 0.0
    %v947 = vmax.f32 %v931, 0.0
    %v948 = vmax.f32 %v932, 0.0
    %v949 = vmax.f32 %v933, 0.0
    %v950 = vmax.f32 %v934, 0.0
    %v951 = vmax.f32 %v935, 0.0
    %v952 = vmax.f32 %v936, 0.0
    %v953 = vmax.f32 %v937, 0.0
    %v954 = vmax.f32 %v938, 0.0
    %v955 = vmax.f32 %v939, 0.0
    %v956 = vmax.f32 %v940, 0.0
    %v957 = vmax.f32 %v941, 0.0
    %v958 = vmax.f32 %v942, 0.0
    %v959 = vmax.f32 %v943, 0.0
    %v960 = vmax.f32 %v944, 0.0
    %v961 = vmax.f32 %v945, 0.0
    %v978 = vrot.slane %v947, 7
    %vm979 = vcmask 1041409
    %v980 = vsel %vm979, %v978, %v946
    %v981 = vrot.slane %v948, 6
    %vm982 = vcmask 1042434
    %v983 = vsel %vm982, %v981, %v980
    %v984 = vrot.slane %v949, 5
    %vm985 = vcmask 1043459
    %v986 = vsel %vm985, %v984, %v983
    %v987 = vrot.slane %v950, 4
    %vm988 = vcmask 1044484
    %v989 = vsel %vm988, %v987, %v986
    %v990 = vrot.slane %v951, 3
    %vm991 = vcmask 1045509
    %v992 = vsel %vm991, %v990, %v989
    %v993 = vrot.slane %v952, 2
    %vm994 = vcmask 1046534
    %v995 = vsel %vm994, %v993, %v992
    %v996 = vrot.slane %v953, 1
    %vm997 = vcmask 1047559
    %v998 = vsel %vm997, %v996, %v995
    %v999 = vrot.slane %v955, 7
    %v1000 = vsel %vm979, %v999, %v954
    %v1001 = vrot.slane %v956, 6
    %v1002 = vsel %vm982, %v1001, %v1000
    %v1003 = vrot.slane %v957, 5
    %v1004 = vsel %vm985, %v1003, %v1002
    %v1005 = vrot.slane %v958, 4
    %v1006 = vsel %vm988, %v1005, %v1004
    %v1007 = vrot.slane %v959, 3
    %v1008 = vsel %vm991, %v1007, %v1006
    %v1009 = vrot.slane %v960, 2
    %v1010 = vsel %vm994, %v1009, %v1008
    %v1011 = vrot.slane %v961, 1
    %v1012 = vsel %vm997, %v1011, %v1010
    %1015 = vst [vmem:[#allocation2] sm:$0xff] %v998
    %1016 = vst [vmem:[#allocation2 + $0x8] sm:$0xff] %v1012
    // Predicated region
    $region14: #{tpu_custom_call.1} parent=1 // pred_check
      _
    $region15: #{tpu_custom_call.1} parent=1 // pred_check_branch
      %1018 = sbr.rel (0) target = $region17
    $region16: #{tpu_custom_call.1} parent=1 // pred_region
      %1020 = vsyncadd [#allocation3], 0
      %s1021 = sshll.u32 [#allocation2], 4
      %s1022 = int_to_ptr.vmem [resolvable:$true] %s1021
      %s1023 = sshll.u32 %s3, 4
      %s1024 = int_to_ptr.hbm [resolvable:$true] %s1023
      %1029 = dma.vmem_to_hbm [thread:$0]  %s1022, 256, %s1024, [#allocation3], 128, 128, 8
    $region17: #{tpu_custom_call.1} parent=1 // pred_fallthru
      _
    // Predicated region
    $region18: #{tpu_custom_call.1} parent=1 // pred_check
      _
    $region19: #{tpu_custom_call.1} parent=1 // pred_check_branch
      %1031 = sbr.rel (0) target = $region21
    $region20: #{tpu_custom_call.1} parent=1 // pred_region
      %1033 = dma.done [#allocation3], 256
    $region21: #{tpu_custom_call.1} parent=1 // pred_fallthru
      _
    %1034 = vsyncpa [#allocation3], 1

</llo_original>
